<compile_context>
chip_gen: v7x
topology: tpu7x:2x2x1
jax: 0.10.0
libtpu: 0.0.40
codegen_flags: <defaults>
</compile_context>

<pallas_src>
import math

import jax
import jax.numpy as jnp
from jax.experimental import pallas as pl
from jax.experimental.pallas import tpu as pltpu

HIDDEN = 64
# Rows of x per grid step. 4096 x 1024 bf16 tile = 8 MiB double-buffered
# -> comfortably inside v7x's 64 MiB VMEM while amortizing per-step overhead.
TILE_B_MAX = 4096


def _round_up(n, m):
    return ((n + m - 1) // m) * m


def mlp_kernel(x_ref, w1_ref, b1_ref, w2_ref, b2_ref, w3_ref, b3_ref, o_ref):
    """Three chained MXU matmuls on one (TILE_B, input_dim) activation tile.

    x / weights are bf16, accumulation is f32, biases + output are f32.
    """
    # Layer 1: Linear(input_dim, 64) + ReLU
    h1 = jnp.dot(x_ref[...], w1_ref[...], preferred_element_type=jnp.float32)
    h1 = jnp.maximum(h1 + b1_ref[...], 0.0)
    # Layer 2: Linear(64, 64) + ReLU
    h2 = jnp.dot(h1.astype(w2_ref.dtype), w2_ref[...],
                 preferred_element_type=jnp.float32)
    h2 = jnp.maximum(h2 + b2_ref[...], 0.0)
    # Layer 3: Linear(64, output_dim)  (logits, no activation)
    out = jnp.dot(h2.astype(w3_ref.dtype), w3_ref[...],
                  preferred_element_type=jnp.float32)
    o_ref[...] = (out + b3_ref[...]).astype(o_ref.dtype)


def mlp_forward(x, params, *, tile_b_max=TILE_B_MAX):
    """x: (B, ...) of any trailing shape; flatten glue in plain JAX."""
    w1, b1, w2, b2, w3, b3 = params
    B = x.shape[0]
    input_dim = w1.shape[0]
    out_dim = w3.shape[1]

    # == nn.Flatten(); bf16 halves the dominant HBM read stream.
    x2d = x.reshape(B, -1).astype(jnp.bfloat16)
    assert x2d.shape[1] == input_dim

    # Weights in bf16 (native MXU mode; a few tens of KB total), biases in f32.
    w1b, w2b, w3b = (w.astype(jnp.bfloat16) for w in (w1, w2, w3))
    b1f, b2f, b3f = (b.astype(jnp.float32) for b in (b1, b2, b3))

    # Pad batch so every tile is sublane-aligned and the grid divides exactly
    # (Pallas does not bounds-check VMEM refs; padded rows are sliced away).
    tile_b = min(tile_b_max, _round_up(B, 8))
    b_pad = _round_up(B, tile_b)
    if b_pad != B:
        x2d = jnp.pad(x2d, ((0, b_pad - B), (0, 0)))
    num_tiles = pl.cdiv(b_pad, tile_b)

    flops = 2 * b_pad * (input_dim * HIDDEN + HIDDEN * HIDDEN + HIDDEN * out_dim)
    bytes_accessed = (
        b_pad * input_dim * 2                                             # x (bf16)
        + b_pad * out_dim * 4                                             # logits (f32)
        + (input_dim * HIDDEN + HIDDEN * HIDDEN + HIDDEN * out_dim) * 2   # weights
        + (HIDDEN + HIDDEN + out_dim) * 4)                                # biases

    resident = lambda shape: pl.BlockSpec(shape, lambda i: (0, 0))

    out = pl.pallas_call(
        mlp_kernel,
        out_shape=jax.ShapeDtypeStruct((b_pad, out_dim), jnp.float32),
        grid=(num_tiles,),
        in_specs=[
            pl.BlockSpec((tile_b, input_dim), lambda i: (i, 0)),  # x streams by tile
            resident(w1b.shape), resident(b1f.shape),             # weights/biases stay
            resident(w2b.shape), resident(b2f.shape),             # resident in VMEM
            resident(w3b.shape), resident(b3f.shape),
        ],
        out_specs=pl.BlockSpec((tile_b, out_dim), lambda i: (i, 0)),
        compiler_params=pltpu.CompilerParams(
            dimension_semantics=("parallel",)),                   # megacore on v7x
        cost_estimate=pl.CostEstimate(
            flops=flops, transcendentals=0, bytes_accessed=bytes_accessed),
    )(x2d, w1b, b1f, w2b, b2f, w3b, b3f)

    return out[:B]


def init_params(key, input_dim, output_dim, hidden=HIDDEN):
    """Deterministic init mimicking torch.nn.Linear (uniform +/- 1/sqrt(fan_in)).

    Weights stored as (in_features, out_features); biases as (1, out) so they
    live as 2-D tiles in VMEM and broadcast over the batch.
    """
    keys = jax.random.split(key, 6)

    def linear(kw, kb, fan_in, fan_out):
        bound = 1.0 / math.sqrt(fan_in)
        w = jax.random.uniform(kw, (fan_in, fan_out), jnp.float32, -bound, bound)
        b = jax.random.uniform(kb, (1, fan_out), jnp.float32, -bound, bound)
        return w, b

    w1, b1 = linear(keys[0], keys[1], input_dim, hidden)
    w2, b2 = linear(keys[2], keys[3], hidden, hidden)
    w3, b3 = linear(keys[4], keys[5], hidden, output_dim)
    return (w1, b1, w2, b2, w3, b3)


def reference_forward(x, params):
    """Pure-JAX reference mirroring the kernel's bf16 rounding exactly."""
    w1, b1, w2, b2, w3, b3 = params
    bf = lambda a: a.astype(jnp.bfloat16).astype(jnp.float32)
    hp = jax.lax.Precision.HIGHEST
    x2d = bf(x.reshape(x.shape[0], -1))
    h1 = jnp.maximum(jnp.dot(x2d, bf(w1), precision=hp) + b1, 0.0)
    h2 = jnp.maximum(jnp.dot(bf(h1), bf(w2), precision=hp) + b2, 0.0)
    return jnp.dot(bf(h2), bf(w3), precision=hp) + b3


if __name__ == "__main__":
    key = jax.random.PRNGKey(0)
    k_x, k_p = jax.random.split(key)

    # batch=2, channels=4, 16x16 spatial -> input_dim = 4*16*16 = 1024
    x = jax.random.normal(k_x, (2, 4, 16, 16), dtype=jnp.float32)
    input_dim = 4 * 16 * 16
    output_dim = 8

    params = init_params(k_p, input_dim, output_dim)

    logits = mlp_forward(x, params)
    jax.block_until_ready(logits)

    ref = reference_forward(x, params)
    assert logits.shape == (2, output_dim), logits.shape
    assert jnp.allclose(logits, ref, atol=1e-3, rtol=1e-3), \
        float(jnp.max(jnp.abs(logits - ref)))

    print("KERNEL_OK")
</pallas_src>

<mosaic_0001>
module attributes {stable_mosaic.version = 11 : i64} {
  func.func @mlp_kernel(%arg0: i32, %arg1: memref<8x1024xbf16, #tpu.memory_space<vmem>>, %arg2: memref<1024x64xbf16, #tpu.memory_space<vmem>>, %arg3: memref<1x64xf32, #tpu.memory_space<vmem>>, %arg4: memref<64x64xbf16, #tpu.memory_space<vmem>>, %arg5: memref<1x64xf32, #tpu.memory_space<vmem>>, %arg6: memref<64x8xbf16, #tpu.memory_space<vmem>>, %arg7: memref<1x8xf32, #tpu.memory_space<vmem>>, %arg8: memref<8x8xf32, #tpu.memory_space<vmem>>) attributes {dimension_semantics = [#tpu.dimension_semantics<parallel>], iteration_bounds = array<i64: 1>, scalar_prefetch = 0 : i64, scratch_operands = 0 : i64, tpu.core_type = #tpu.core_type<tc>, window_params = [{transform_indices = @transform_0, window_bounds = array<i64: 8, 1024>}, {pipeline_mode = #tpu.pipeline_mode<synchronous>, transform_indices = @transform_1, window_bounds = array<i64: 1024, 64>}, {pipeline_mode = #tpu.pipeline_mode<synchronous>, transform_indices = @transform_2, window_bounds = array<i64: 1, 64>}, {pipeline_mode = #tpu.pipeline_mode<synchronous>, transform_indices = @transform_3, window_bounds = array<i64: 64, 64>}, {pipeline_mode = #tpu.pipeline_mode<synchronous>, transform_indices = @transform_4, window_bounds = array<i64: 1, 64>}, {pipeline_mode = #tpu.pipeline_mode<synchronous>, transform_indices = @transform_5, window_bounds = array<i64: 64, 8>}, {pipeline_mode = #tpu.pipeline_mode<synchronous>, transform_indices = @transform_6, window_bounds = array<i64: 1, 8>}, {transform_indices = @transform_7, window_bounds = array<i64: 8, 8>}]} {
    %c0 = arith.constant 0 : index
    %c0_0 = arith.constant 0 : index
    %0 = vector.load %arg1[%c0, %c0_0] : memref<8x1024xbf16, #tpu.memory_space<vmem>>, vector<8x1024xbf16>
    %c0_1 = arith.constant 0 : index
    %c0_2 = arith.constant 0 : index
    %1 = vector.load %arg2[%c0_1, %c0_2] : memref<1024x64xbf16, #tpu.memory_space<vmem>>, vector<1024x64xbf16>
    %cst = arith.constant dense<0.000000e+00> : vector<8x64xf32>
    %2 = tpu.matmul %0, %1, %cst {dimension_numbers = #tpu.dot_dimension_numbers<[1], [0], [0], [1], [0, 0, 1, 1], [], []>} : vector<8x1024xbf16>, vector<1024x64xbf16>, vector<8x64xf32> -> vector<8x64xf32>
    %c0_3 = arith.constant 0 : index
    %c0_4 = arith.constant 0 : index
    %3 = vector.load %arg3[%c0_3, %c0_4] : memref<1x64xf32, #tpu.memory_space<vmem>>, vector<1x64xf32>
    %4 = vector.broadcast %3 : vector<1x64xf32> to vector<8x64xf32>
    %5 = arith.addf %2, %4 : vector<8x64xf32>
    %cst_5 = arith.constant 0.000000e+00 : f32
    %6 = vector.broadcast %cst_5 : f32 to vector<8x64xf32>
    %7 = arith.maximumf %5, %6 : vector<8x64xf32>
    %8 = arith.truncf %7 : vector<8x64xf32> to vector<8x64xbf16>
    %c0_6 = arith.constant 0 : index
    %c0_7 = arith.constant 0 : index
    %9 = vector.load %arg4[%c0_6, %c0_7] : memref<64x64xbf16, #tpu.memory_space<vmem>>, vector<64x64xbf16>
    %cst_8 = arith.constant dense<0.000000e+00> : vector<8x64xf32>
    %10 = tpu.matmul %8, %9, %cst_8 {dimension_numbers = #tpu.dot_dimension_numbers<[1], [0], [0], [1], [0, 0, 1, 1], [], []>} : vector<8x64xbf16>, vector<64x64xbf16>, vector<8x64xf32> -> vector<8x64xf32>
    %c0_9 = arith.constant 0 : index
    %c0_10 = arith.constant 0 : index
    %11 = vector.load %arg5[%c0_9, %c0_10] : memref<1x64xf32, #tpu.memory_space<vmem>>, vector<1x64xf32>
    %12 = vector.broadcast %11 : vector<1x64xf32> to vector<8x64xf32>
    %13 = arith.addf %10, %12 : vector<8x64xf32>
    %cst_11 = arith.constant 0.000000e+00 : f32
    %14 = vector.broadcast %cst_11 : f32 to vector<8x64xf32>
    %15 = arith.maximumf %13, %14 : vector<8x64xf32>
    %16 = arith.truncf %15 : vector<8x64xf32> to vector<8x64xbf16>
    %c0_12 = arith.constant 0 : index
    %c0_13 = arith.constant 0 : index
    %17 = vector.load %arg6[%c0_12, %c0_13] : memref<64x8xbf16, #tpu.memory_space<vmem>>, vector<64x8xbf16>
    %cst_14 = arith.constant dense<0.000000e+00> : vector<8x8xf32>
    %18 = tpu.matmul %16, %17, %cst_14 {dimension_numbers = #tpu.dot_dimension_numbers<[1], [0], [0], [1], [0, 0, 1, 1], [], []>} : vector<8x64xbf16>, vector<64x8xbf16>, vector<8x8xf32> -> vector<8x8xf32>
    %c0_15 = arith.constant 0 : index
    %c0_16 = arith.constant 0 : index
    %19 = vector.load %arg7[%c0_15, %c0_16] : memref<1x8xf32, #tpu.memory_space<vmem>>, vector<1x8xf32>
    %20 = vector.broadcast %19 : vector<1x8xf32> to vector<8x8xf32>
    %21 = arith.addf %18, %20 : vector<8x8xf32>
    %c0_17 = arith.constant 0 : index
    %c0_18 = arith.constant 0 : index
    %22 = vector.load %arg8[%c0_17, %c0_18] : memref<8x8xf32, #tpu.memory_space<vmem>>, vector<8x8xf32>
    tpu.vector_store %arg8[%c0_17, %c0_18], %21 {strides = array<i32>} : memref<8x8xf32, #tpu.memory_space<vmem>>, vector<8x8xf32>,
    return
  }
  func.func @transform_0(%arg0: i32) -> (i32, i32) {
    %c0_i32 = arith.constant 0 : i32
    %c0_i32_0 = arith.constant 0 : i32
    return %arg0, %c0_i32 : i32, i32
  }
  func.func @transform_1(%arg0: i32) -> (i32, i32) {
    %c0_i32 = arith.constant 0 : i32
    %c0_i32_0 = arith.constant 0 : i32
    %c0_i32_1 = arith.constant 0 : i32
    return %c0_i32, %c0_i32_0 : i32, i32
  }
  func.func @transform_2(%arg0: i32) -> (i32, i32) {
    %c0_i32 = arith.constant 0 : i32
    %c0_i32_0 = arith.constant 0 : i32
    %c0_i32_1 = arith.constant 0 : i32
    return %c0_i32, %c0_i32_0 : i32, i32
  }
  func.func @transform_3(%arg0: i32) -> (i32, i32) {
    %c0_i32 = arith.constant 0 : i32
    %c0_i32_0 = arith.constant 0 : i32
    %c0_i32_1 = arith.constant 0 : i32
    return %c0_i32, %c0_i32_0 : i32, i32
  }
  func.func @transform_4(%arg0: i32) -> (i32, i32) {
    %c0_i32 = arith.constant 0 : i32
    %c0_i32_0 = arith.constant 0 : i32
    %c0_i32_1 = arith.constant 0 : i32
    return %c0_i32, %c0_i32_0 : i32, i32
  }
  func.func @transform_5(%arg0: i32) -> (i32, i32) {
    %c0_i32 = arith.constant 0 : i32
    %c0_i32_0 = arith.constant 0 : i32
    %c0_i32_1 = arith.constant 0 : i32
    return %c0_i32, %c0_i32_0 : i32, i32
  }
  func.func @transform_6(%arg0: i32) -> (i32, i32) {
    %c0_i32 = arith.constant 0 : i32
    %c0_i32_0 = arith.constant 0 : i32
    %c0_i32_1 = arith.constant 0 : i32
    return %c0_i32, %c0_i32_0 : i32, i32
  }
  func.func @transform_7(%arg0: i32) -> (i32, i32) {
    %c0_i32 = arith.constant 0 : i32
    %c0_i32_0 = arith.constant 0 : i32
    return %arg0, %c0_i32 : i32, i32
  }
}

</mosaic_0001>

<llo_original>
// kernel: tpu_custom_call.1
$region0: #{tpu_custom_call.1}
  #allocation0 [shape = 'u32[]', space=smem, size = 0x4, offset = 0x4, fixed_abs, tag = 'smem constant byte address 0x4 - core index']
  #allocation1 [shape = 'u32[144,128]{1,0:T(1,128)}', space=vmem, size = 0x12000, scoped, tag = 'internal scratch']
  %s0 = inlined_call_operand.vmem [shape: bf16[8,1024], index: 0, kind: input, shape index: {}]
  %s1 = inlined_call_operand.vmem [shape: bf16[1024,64], index: 1, kind: input, shape index: {}]
  %s2 = inlined_call_operand.vmem [shape: f32[1,64], index: 2, kind: input, shape index: {}]
  %s3 = inlined_call_operand.vmem [shape: bf16[64,64], index: 3, kind: input, shape index: {}]
  %s4 = inlined_call_operand.vmem [shape: f32[1,64], index: 4, kind: input, shape index: {}]
  %s5 = inlined_call_operand.vmem [shape: bf16[64,8], index: 5, kind: input, shape index: {}]
  %s6 = inlined_call_operand.vmem [shape: f32[1,8], index: 6, kind: input, shape index: {}]
  %s7 = inlined_call_operand.hbm [shape: f32[8,8], index: 7, kind: output, shape index: {}]
  %s8 = sld [smem:[#allocation0]]
  $region38: #{tpu_custom_call.1} parent=0
    _
  %s10 = ssub.s32 1, %s8
  %s11 = scalar_select 0, %s10, %s8
  $region1: #{tpu_custom_call.1} parent=0
    #allocation2 [shape = 'u8[4096]{0}', space=vmem, size = 0x1000, scoped, tag = 'output window, operand 0, single buffered']
    #allocation3 [shape = 's32[1]{0}', space=sflag, size = 0x4, scoped, tag = 'scoped memory for tpu_custom_call.1']
    %12 = vsyncpa [#allocation3], 0
    // Predicated region
    $region2: #{tpu_custom_call.1} parent=1 // pred_check
      _
    $region3: #{tpu_custom_call.1} parent=1 // pred_check_branch
      %14 = sbr.rel (0) target = $region5
    $region4: #{tpu_custom_call.1} parent=1 // pred_region
      _
    $region5: #{tpu_custom_call.1} parent=1 // pred_fallthru
      _
    // Predicated region
    $region6: #{tpu_custom_call.1} parent=1 // pred_check
      _
    $region7: #{tpu_custom_call.1} parent=1 // pred_check_branch
      %16 = sbr.rel (0) target = $region9
    $region8: #{tpu_custom_call.1} parent=1 // pred_region
      _
    $region9: #{tpu_custom_call.1} parent=1 // pred_fallthru
      _
    // Predicated region
    $region10: #{tpu_custom_call.1} parent=1 // pred_check
      _
    $region11: #{tpu_custom_call.1} parent=1 // pred_check_branch
      %18 = sbr.rel (0) target = $region13
    $region12: #{tpu_custom_call.1} parent=1 // pred_region
      _
    $region13: #{tpu_custom_call.1} parent=1 // pred_fallthru
      _
    // Predicated region
    $region14: #{tpu_custom_call.1} parent=1 // pred_check
      _
    $region15: #{tpu_custom_call.1} parent=1 // pred_check_branch
      %20 = sbr.rel (0) target = $region17
    $region16: #{tpu_custom_call.1} parent=1 // pred_region
      _
    $region17: #{tpu_custom_call.1} parent=1 // pred_fallthru
      _
    // Predicated region
    $region18: #{tpu_custom_call.1} parent=1 // pred_check
      _
    $region19: #{tpu_custom_call.1} parent=1 // pred_check_branch
      %22 = sbr.rel (0) target = $region21
    $region20: #{tpu_custom_call.1} parent=1 // pred_region
      _
    $region21: #{tpu_custom_call.1} parent=1 // pred_fallthru
      _
    // Predicated region
    $region22: #{tpu_custom_call.1} parent=1 // pred_check
      _
    $region23: #{tpu_custom_call.1} parent=1 // pred_check_branch
      %24 = sbr.rel (0) target = $region25
    $region24: #{tpu_custom_call.1} parent=1 // pred_region
      _
    $region25: #{tpu_custom_call.1} parent=1 // pred_fallthru
      _
    // Predicated region
    $region26: #{tpu_custom_call.1} parent=1 // pred_check
      _
    $region27: #{tpu_custom_call.1} parent=1 // pred_check_branch
      %26 = sbr.rel (0) target = $region29
    $region28: #{tpu_custom_call.1} parent=1 // pred_region
      _
    $region29: #{tpu_custom_call.1} parent=1 // pred_fallthru
      _
    %v28 = vld [vmem:[%s0] sm:$0xff]
    %v29 = vld [vmem:[%s0 + $0x8] sm:$0xff]
    %v30 = vld [vmem:[%s0 + $0x10] sm:$0xff]
    %v31 = vld [vmem:[%s0 + $0x18] sm:$0xff]
    %v32 = vld [vmem:[%s1] sm:$0xf]
    %v33 = vld [vmem:[%s1 + $0x4] sm:$0xf]
    %v34 = vld [vmem:[%s1 + $0x8] sm:$0xf]
    %v35 = vld [vmem:[%s1 + $0xc] sm:$0xf]
    %v36 = vld [vmem:[%s1 + $0x10] sm:$0xf]
    %v37 = vld [vmem:[%s1 + $0x14] sm:$0xf]
    %v38 = vld [vmem:[%s1 + $0x18] sm:$0xf]
    %v39 = vld [vmem:[%s1 + $0x1c] sm:$0xf]
    %v40 = vld [vmem:[%s1 + $0x20] sm:$0xf]
    %v41 = vld [vmem:[%s1 + $0x24] sm:$0xf]
    %v42 = vld [vmem:[%s1 + $0x28] sm:$0xf]
    %v43 = vld [vmem:[%s1 + $0x2c] sm:$0xf]
    %v44 = vld [vmem:[%s1 + $0x30] sm:$0xf]
    %v45 = vld [vmem:[%s1 + $0x34] sm:$0xf]
    %v46 = vld [vmem:[%s1 + $0x38] sm:$0xf]
    %v47 = vld [vmem:[%s1 + $0x3c] sm:$0xf]
    %v48 = vld [vmem:[%s1 + $0x40] sm:$0xf]
    %v49 = vld [vmem:[%s1 + $0x44] sm:$0xf]
    %v50 = vld [vmem:[%s1 + $0x48] sm:$0xf]
    %v51 = vld [vmem:[%s1 + $0x4c] sm:$0xf]
    %v52 = vld [vmem:[%s1 + $0x50] sm:$0xf]
    %v53 = vld [vmem:[%s1 + $0x54] sm:$0xf]
    %v54 = vld [vmem:[%s1 + $0x58] sm:$0xf]
    %v55 = vld [vmem:[%s1 + $0x5c] sm:$0xf]
    %v56 = vld [vmem:[%s1 + $0x60] sm:$0xf]
    %v57 = vld [vmem:[%s1 + $0x64] sm:$0xf]
    %v58 = vld [vmem:[%s1 + $0x68] sm:$0xf]
    %v59 = vld [vmem:[%s1 + $0x6c] sm:$0xf]
    %v60 = vld [vmem:[%s1 + $0x70] sm:$0xf]
    %v61 = vld [vmem:[%s1 + $0x74] sm:$0xf]
    %v62 = vld [vmem:[%s1 + $0x78] sm:$0xf]
    %v63 = vld [vmem:[%s1 + $0x7c] sm:$0xf]
    %v64 = vld [vmem:[%s1 + $0x80] sm:$0xf]
    %v65 = vld [vmem:[%s1 + $0x84] sm:$0xf]
    %v66 = vld [vmem:[%s1 + $0x88] sm:$0xf]
    %v67 = vld [vmem:[%s1 + $0x8c] sm:$0xf]
    %v68 = vld [vmem:[%s1 + $0x90] sm:$0xf]
    %v69 = vld [vmem:[%s1 + $0x94] sm:$0xf]
    %v70 = vld [vmem:[%s1 + $0x98] sm:$0xf]
    %v71 = vld [vmem:[%s1 + $0x9c] sm:$0xf]
    %v72 = vld [vmem:[%s1 + $0xa0] sm:$0xf]
    %v73 = vld [vmem:[%s1 + $0xa4] sm:$0xf]
    %v74 = vld [vmem:[%s1 + $0xa8] sm:$0xf]
    %v75 = vld [vmem:[%s1 + $0xac] sm:$0xf]
    %v76 = vld [vmem:[%s1 + $0xb0] sm:$0xf]
    %v77 = vld [vmem:[%s1 + $0xb4] sm:$0xf]
    %v78 = vld [vmem:[%s1 + $0xb8] sm:$0xf]
    %v79 = vld [vmem:[%s1 + $0xbc] sm:$0xf]
    %v80 = vld [vmem:[%s1 + $0xc0] sm:$0xf]
    %v81 = vld [vmem:[%s1 + $0xc4] sm:$0xf]
    %v82 = vld [vmem:[%s1 + $0xc8] sm:$0xf]
    %v83 = vld [vmem:[%s1 + $0xcc] sm:$0xf]
    %v84 = vld [vmem:[%s1 + $0xd0] sm:$0xf]
    %v85 = vld [vmem:[%s1 + $0xd4] sm:$0xf]
    %v86 = vld [vmem:[%s1 + $0xd8] sm:$0xf]
    %v87 = vld [vmem:[%s1 + $0xdc] sm:$0xf]
    %v88 = vld [vmem:[%s1 + $0xe0] sm:$0xf]
    %v89 = vld [vmem:[%s1 + $0xe4] sm:$0xf]
    %v90 = vld [vmem:[%s1 + $0xe8] sm:$0xf]
    %v91 = vld [vmem:[%s1 + $0xec] sm:$0xf]
    %v92 = vld [vmem:[%s1 + $0xf0] sm:$0xf]
    %v93 = vld [vmem:[%s1 + $0xf4] sm:$0xf]
    %v94 = vld [vmem:[%s1 + $0xf8] sm:$0xf]
    %v95 = vld [vmem:[%s1 + $0xfc] sm:$0xf]
    %v96 = vld [vmem:[%s1 + $0x100] sm:$0xf]
    %v97 = vld [vmem:[%s1 + $0x104] sm:$0xf]
    %v98 = vld [vmem:[%s1 + $0x108] sm:$0xf]
    %v99 = vld [vmem:[%s1 + $0x10c] sm:$0xf]
    %v100 = vld [vmem:[%s1 + $0x110] sm:$0xf]
    %v101 = vld [vmem:[%s1 + $0x114] sm:$0xf]
    %v102 = vld [vmem:[%s1 + $0x118] sm:$0xf]
    %v103 = vld [vmem:[%s1 + $0x11c] sm:$0xf]
    %v104 = vld [vmem:[%s1 + $0x120] sm:$0xf]
    %v105 = vld [vmem:[%s1 + $0x124] sm:$0xf]
    %v106 = vld [vmem:[%s1 + $0x128] sm:$0xf]
    %v107 = vld [vmem:[%s1 + $0x12c] sm:$0xf]
    %v108 = vld [vmem:[%s1 + $0x130] sm:$0xf]
    %v109 = vld [vmem:[%s1 + $0x134] sm:$0xf]
    %v110 = vld [vmem:[%s1 + $0x138] sm:$0xf]
    %v111 = vld [vmem:[%s1 + $0x13c] sm:$0xf]
    %v112 = vld [vmem:[%s1 + $0x140] sm:$0xf]
    %v113 = vld [vmem:[%s1 + $0x144] sm:$0xf]
    %v114 = vld [vmem:[%s1 + $0x148] sm:$0xf]
    %v115 = vld [vmem:[%s1 + $0x14c] sm:$0xf]
    %v116 = vld [vmem:[%s1 + $0x150] sm:$0xf]
    %v117 = vld [vmem:[%s1 + $0x154] sm:$0xf]
    %v118 = vld [vmem:[%s1 + $0x158] sm:$0xf]
    %v119 = vld [vmem:[%s1 + $0x15c] sm:$0xf]
    %v120 = vld [vmem:[%s1 + $0x160] sm:$0xf]
    %v121 = vld [vmem:[%s1 + $0x164] sm:$0xf]
    %v122 = vld [vmem:[%s1 + $0x168] sm:$0xf]
    %v123 = vld [vmem:[%s1 + $0x16c] sm:$0xf]
    %v124 = vld [vmem:[%s1 + $0x170] sm:$0xf]
    %v125 = vld [vmem:[%s1 + $0x174] sm:$0xf]
    %v126 = vld [vmem:[%s1 + $0x178] sm:$0xf]
    %v127 = vld [vmem:[%s1 + $0x17c] sm:$0xf]
    %v128 = vld [vmem:[%s1 + $0x180] sm:$0xf]
    %v129 = vld [vmem:[%s1 + $0x184] sm:$0xf]
    %v130 = vld [vmem:[%s1 + $0x188] sm:$0xf]
    %v131 = vld [vmem:[%s1 + $0x18c] sm:$0xf]
    %v132 = vld [vmem:[%s1 + $0x190] sm:$0xf]
    %v133 = vld [vmem:[%s1 + $0x194] sm:$0xf]
    %v134 = vld [vmem:[%s1 + $0x198] sm:$0xf]
    %v135 = vld [vmem:[%s1 + $0x19c] sm:$0xf]
    %v136 = vld [vmem:[%s1 + $0x1a0] sm:$0xf]
    %v137 = vld [vmem:[%s1 + $0x1a4] sm:$0xf]
    %v138 = vld [vmem:[%s1 + $0x1a8] sm:$0xf]
    %v139 = vld [vmem:[%s1 + $0x1ac] sm:$0xf]
    %v140 = vld [vmem:[%s1 + $0x1b0] sm:$0xf]
    %v141 = vld [vmem:[%s1 + $0x1b4] sm:$0xf]
    %v142 = vld [vmem:[%s1 + $0x1b8] sm:$0xf]
    %v143 = vld [vmem:[%s1 + $0x1bc] sm:$0xf]
    %v144 = vld [vmem:[%s1 + $0x1c0] sm:$0xf]
    %v145 = vld [vmem:[%s1 + $0x1c4] sm:$0xf]
    %v146 = vld [vmem:[%s1 + $0x1c8] sm:$0xf]
    %v147 = vld [vmem:[%s1 + $0x1cc] sm:$0xf]
    %v148 = vld [vmem:[%s1 + $0x1d0] sm:$0xf]
    %v149 = vld [vmem:[%s1 + $0x1d4] sm:$0xf]
    %v150 = vld [vmem:[%s1 + $0x1d8] sm:$0xf]
    %v151 = vld [vmem:[%s1 + $0x1dc] sm:$0xf]
    %v152 = vld [vmem:[%s1 + $0x1e0] sm:$0xf]
    %v153 = vld [vmem:[%s1 + $0x1e4] sm:$0xf]
    %v154 = vld [vmem:[%s1 + $0x1e8] sm:$0xf]
    %v155 = vld [vmem:[%s1 + $0x1ec] sm:$0xf]
    %v156 = vld [vmem:[%s1 + $0x1f0] sm:$0xf]
    %v157 = vld [vmem:[%s1 + $0x1f4] sm:$0xf]
    %v158 = vld [vmem:[%s1 + $0x1f8] sm:$0xf]
    %v159 = vld [vmem:[%s1 + $0x1fc] sm:$0xf]
    %v160 = vld [vmem:[%s2] sm:$0x1]
    %v162 = vlaneseq
    %v163 = vshrl.u32 %v162, 7
    %v164 = vsub.s32 0, %v163
    %v165 = vrot.slane %v160, %v164
    %v171 = vunpack.c.l.b16 %v28
    %v172 = vunpack.c.h.b16 %v28
    %v173 = vunpack.c.l.b16 %v29
    %v174 = vunpack.c.h.b16 %v29
    %v175 = vunpack.c.l.b16 %v30
    %v176 = vunpack.c.h.b16 %v30
    %v177 = vunpack.c.l.b16 %v31
    %v178 = vunpack.c.h.b16 %v31
    %v179 = vpack.c.b16 %v171, %v171
    %v180 = vpack.c.b16 %v172, %v172
    %v181 = vpack.c.b16 %v173, %v173
    %v182 = vpack.c.b16 %v174, %v174
    %v183 = vpack.c.b16 %v175, %v175
    %v184 = vpack.c.b16 %v176, %v176
    %v185 = vpack.c.b16 %v177, %v177
    %v186 = vpack.c.b16 %v178, %v178
    %v323 = vunpack.c.l.b16 %v32
    %v324 = vunpack.c.l.b16 %v33
    %v325 = vunpack.c.l.b16 %v34
    %v326 = vunpack.c.l.b16 %v35
    %v327 = vunpack.c.l.b16 %v36
    %v328 = vunpack.c.l.b16 %v37
    %v329 = vunpack.c.l.b16 %v38
    %v330 = vunpack.c.l.b16 %v39
    %v331 = vunpack.c.l.b16 %v40
    %v332 = vunpack.c.l.b16 %v41
    %v333 = vunpack.c.l.b16 %v42
    %v334 = vunpack.c.l.b16 %v43
    %v335 = vunpack.c.l.b16 %v44
    %v336 = vunpack.c.l.b16 %v45
    %v337 = vunpack.c.l.b16 %v46
    %v338 = vunpack.c.l.b16 %v47
    %v339 = vunpack.c.l.b16 %v48
    %v340 = vunpack.c.l.b16 %v49
    %v341 = vunpack.c.l.b16 %v50
    %v342 = vunpack.c.l.b16 %v51
    %v343 = vunpack.c.l.b16 %v52
    %v344 = vunpack.c.l.b16 %v53
    %v345 = vunpack.c.l.b16 %v54
    %v346 = vunpack.c.l.b16 %v55
    %v347 = vunpack.c.l.b16 %v56
    %v348 = vunpack.c.l.b16 %v57
    %v349 = vunpack.c.l.b16 %v58
    %v350 = vunpack.c.l.b16 %v59
    %v351 = vunpack.c.l.b16 %v60
    %v352 = vunpack.c.l.b16 %v61
    %v353 = vunpack.c.l.b16 %v62
    %v354 = vunpack.c.l.b16 %v63
    %v355 = vunpack.c.l.b16 %v64
    %v356 = vunpack.c.l.b16 %v65
    %v357 = vunpack.c.l.b16 %v66
    %v358 = vunpack.c.l.b16 %v67
    %v359 = vunpack.c.l.b16 %v68
    %v360 = vunpack.c.l.b16 %v69
    %v361 = vunpack.c.l.b16 %v70
    %v362 = vunpack.c.l.b16 %v71
    %v363 = vunpack.c.l.b16 %v72
    %v364 = vunpack.c.l.b16 %v73
    %v365 = vunpack.c.l.b16 %v74
    %v366 = vunpack.c.l.b16 %v75
    %v367 = vunpack.c.l.b16 %v76
    %v368 = vunpack.c.l.b16 %v77
    %v369 = vunpack.c.l.b16 %v78
    %v370 = vunpack.c.l.b16 %v79
    %v371 = vunpack.c.l.b16 %v80
    %v372 = vunpack.c.l.b16 %v81
    %v373 = vunpack.c.l.b16 %v82
    %v374 = vunpack.c.l.b16 %v83
    %v375 = vunpack.c.l.b16 %v84
    %v376 = vunpack.c.l.b16 %v85
    %v377 = vunpack.c.l.b16 %v86
    %v378 = vunpack.c.l.b16 %v87
    %v379 = vunpack.c.l.b16 %v88
    %v380 = vunpack.c.l.b16 %v89
    %v381 = vunpack.c.l.b16 %v90
    %v382 = vunpack.c.l.b16 %v91
    %v383 = vunpack.c.l.b16 %v92
    %v384 = vunpack.c.l.b16 %v93
    %v385 = vunpack.c.l.b16 %v94
    %v386 = vunpack.c.l.b16 %v95
    %v387 = vunpack.c.l.b16 %v96
    %v388 = vunpack.c.l.b16 %v97
    %v389 = vunpack.c.l.b16 %v98
    %v390 = vunpack.c.l.b16 %v99
    %v391 = vunpack.c.l.b16 %v100
    %v392 = vunpack.c.l.b16 %v101
    %v393 = vunpack.c.l.b16 %v102
    %v394 = vunpack.c.l.b16 %v103
    %v395 = vunpack.c.l.b16 %v104
    %v396 = vunpack.c.l.b16 %v105
    %v397 = vunpack.c.l.b16 %v106
    %v398 = vunpack.c.l.b16 %v107
    %v399 = vunpack.c.l.b16 %v108
    %v400 = vunpack.c.l.b16 %v109
    %v401 = vunpack.c.l.b16 %v110
    %v402 = vunpack.c.l.b16 %v111
    %v403 = vunpack.c.l.b16 %v112
    %v404 = vunpack.c.l.b16 %v113
    %v405 = vunpack.c.l.b16 %v114
    %v406 = vunpack.c.l.b16 %v115
    %v407 = vunpack.c.l.b16 %v116
    %v408 = vunpack.c.l.b16 %v117
    %v409 = vunpack.c.l.b16 %v118
    %v410 = vunpack.c.l.b16 %v119
    %v411 = vunpack.c.l.b16 %v120
    %v412 = vunpack.c.l.b16 %v121
    %v413 = vunpack.c.l.b16 %v122
    %v414 = vunpack.c.l.b16 %v123
    %v415 = vunpack.c.l.b16 %v124
    %v416 = vunpack.c.l.b16 %v125
    %v417 = vunpack.c.l.b16 %v126
    %v418 = vunpack.c.l.b16 %v127
    %v419 = vunpack.c.l.b16 %v128
    %v420 = vunpack.c.l.b16 %v129
    %v421 = vunpack.c.l.b16 %v130
    %v422 = vunpack.c.l.b16 %v131
    %v423 = vunpack.c.l.b16 %v132
    %v424 = vunpack.c.l.b16 %v133
    %v425 = vunpack.c.l.b16 %v134
    %v426 = vunpack.c.l.b16 %v135
    %v427 = vunpack.c.l.b16 %v136
    %v428 = vunpack.c.l.b16 %v137
    %v429 = vunpack.c.l.b16 %v138
    %v430 = vunpack.c.l.b16 %v139
    %v431 = vunpack.c.l.b16 %v140
    %v432 = vunpack.c.l.b16 %v141
    %v433 = vunpack.c.l.b16 %v142
    %v434 = vunpack.c.l.b16 %v143
    %v435 = vunpack.c.l.b16 %v144
    %v436 = vunpack.c.l.b16 %v145
    %v437 = vunpack.c.l.b16 %v146
    %v438 = vunpack.c.l.b16 %v147
    %v439 = vunpack.c.l.b16 %v148
    %v440 = vunpack.c.l.b16 %v149
    %v441 = vunpack.c.l.b16 %v150
    %v442 = vunpack.c.l.b16 %v151
    %v443 = vunpack.c.l.b16 %v152
    %v444 = vunpack.c.l.b16 %v153
    %v445 = vunpack.c.l.b16 %v154
    %v446 = vunpack.c.l.b16 %v155
    %v447 = vunpack.c.l.b16 %v156
    %v448 = vunpack.c.l.b16 %v157
    %v449 = vunpack.c.l.b16 %v158
    %v450 = vunpack.c.l.b16 %v159
    %v451 = vpack.c.b16 %v324, %v323
    %v452 = vpack.c.b16 %v326, %v325
    %v453 = vpack.c.b16 %v328, %v327
    %v454 = vpack.c.b16 %v330, %v329
    %v455 = vpack.c.b16 %v332, %v331
    %v456 = vpack.c.b16 %v334, %v333
    %v457 = vpack.c.b16 %v336, %v335
    %v458 = vpack.c.b16 %v338, %v337
    %v459 = vpack.c.b16 %v340, %v339
    %v460 = vpack.c.b16 %v342, %v341
    %v461 = vpack.c.b16 %v344, %v343
    %v462 = vpack.c.b16 %v346, %v345
    %v463 = vpack.c.b16 %v348, %v347
    %v464 = vpack.c.b16 %v350, %v349
    %v465 = vpack.c.b16 %v352, %v351
    %v466 = vpack.c.b16 %v354, %v353
    %v467 = vpack.c.b16 %v356, %v355
    %v468 = vpack.c.b16 %v358, %v357
    %v469 = vpack.c.b16 %v360, %v359
    %v470 = vpack.c.b16 %v362, %v361
    %v471 = vpack.c.b16 %v364, %v363
    %v472 = vpack.c.b16 %v366, %v365
    %v473 = vpack.c.b16 %v368, %v367
    %v474 = vpack.c.b16 %v370, %v369
    %v475 = vpack.c.b16 %v372, %v371
    %v476 = vpack.c.b16 %v374, %v373
    %v477 = vpack.c.b16 %v376, %v375
    %v478 = vpack.c.b16 %v378, %v377
    %v479 = vpack.c.b16 %v380, %v379
    %v480 = vpack.c.b16 %v382, %v381
    %v481 = vpack.c.b16 %v384, %v383
    %v482 = vpack.c.b16 %v386, %v385
    %v483 = vpack.c.b16 %v388, %v387
    %v484 = vpack.c.b16 %v390, %v389
    %v485 = vpack.c.b16 %v392, %v391
    %v486 = vpack.c.b16 %v394, %v393
    %v487 = vpack.c.b16 %v396, %v395
    %v488 = vpack.c.b16 %v398, %v397
    %v489 = vpack.c.b16 %v400, %v399
    %v490 = vpack.c.b16 %v402, %v401
    %v491 = vpack.c.b16 %v404, %v403
    %v492 = vpack.c.b16 %v406, %v405
    %v493 = vpack.c.b16 %v408, %v407
    %v494 = vpack.c.b16 %v410, %v409
    %v495 = vpack.c.b16 %v412, %v411
    %v496 = vpack.c.b16 %v414, %v413
    %v497 = vpack.c.b16 %v416, %v415
    %v498 = vpack.c.b16 %v418, %v417
    %v499 = vpack.c.b16 %v420, %v419
    %v500 = vpack.c.b16 %v422, %v421
    %v501 = vpack.c.b16 %v424, %v423
    %v502 = vpack.c.b16 %v426, %v425
    %v503 = vpack.c.b16 %v428, %v427
    %v504 = vpack.c.b16 %v430, %v429
    %v505 = vpack.c.b16 %v432, %v431
    %v506 = vpack.c.b16 %v434, %v433
    %v507 = vpack.c.b16 %v436, %v435
    %v508 = vpack.c.b16 %v438, %v437
    %v509 = vpack.c.b16 %v440, %v439
    %v510 = vpack.c.b16 %v442, %v441
    %v511 = vpack.c.b16 %v444, %v443
    %v512 = vpack.c.b16 %v446, %v445
    %v513 = vpack.c.b16 %v448, %v447
    %v514 = vpack.c.b16 %v450, %v449
    %579 = vmatprep.subr.bf16.mxu0 0
    %580 = vmatpush1.bf16.msra.mxu0 %v451
    %581 = vmatprep.subr.bf16.mxu0 0
    %582 = vmatpush1.bf16.msra.mxu0 %v452
    %583 = vmatprep.subr.bf16.mxu0 0
    %584 = vmatpush1.bf16.msra.mxu0 %v453
    %585 = vmatprep.subr.bf16.mxu0 0
    %586 = vmatpush1.bf16.msra.mxu0 %v454
    %587 = vmatprep.subr.bf16.mxu0 0
    %588 = vmatpush1.bf16.msra.mxu0 %v455
    %589 = vmatprep.subr.bf16.mxu0 0
    %590 = vmatpush1.bf16.msra.mxu0 %v456
    %591 = vmatprep.subr.bf16.mxu0 0
    %592 = vmatpush1.bf16.msra.mxu0 %v457
    %593 = vmatprep.subr.bf16.mxu0 0
    %594 = vmatpush1.bf16.msra.mxu0 %v458
    %595 = vmatprep.subr.bf16.mxu0 0
    %596 = vmatpush1.bf16.msra.mxu0 %v459
    %597 = vmatprep.subr.bf16.mxu0 0
    %598 = vmatpush1.bf16.msra.mxu0 %v460
    %599 = vmatprep.subr.bf16.mxu0 0
    %600 = vmatpush1.bf16.msra.mxu0 %v461
    %601 = vmatprep.subr.bf16.mxu0 0
    %602 = vmatpush1.bf16.msra.mxu0 %v462
    %603 = vmatprep.subr.bf16.mxu0 0
    %604 = vmatpush1.bf16.msra.mxu0 %v463
    %605 = vmatprep.subr.bf16.mxu0 0
    %606 = vmatpush1.bf16.msra.mxu0 %v464
    %607 = vmatprep.subr.bf16.mxu0 0
    %608 = vmatpush1.bf16.msra.mxu0 %v465
    %609 = vmatprep.subr.bf16.mxu0 0
    %610 = vmatpush1.bf16.msra.mxu0 %v466
    %611 = vmatprep.mubr.bf16.mxu0 %v180
    %612 = vmatmul.mubr.bf16.gmra.mrb[0].mxu0 %v179
    %v613 = vpop.f32.mrb[0].mxu0
    %v614 = vadd.f32 %v165, %v613
    %v615 = vpop.f32.mrb[0].mxu0
    %v616 = vpop.f32.mrb[0].mxu0
    %v617 = vpop.f32.mrb[0].mxu0
    %618 = vdwg.mxu0
    %619 = vmatprep.subr.bf16.mxu0 0
    %620 = vmatpush1.bf16.msra.mxu0 %v467
    %621 = vmatprep.subr.bf16.mxu0 0
    %622 = vmatpush1.bf16.msra.mxu0 %v468
    %623 = vmatprep.subr.bf16.mxu0 0
    %624 = vmatpush1.bf16.msra.mxu0 %v469
    %625 = vmatprep.subr.bf16.mxu0 0
    %626 = vmatpush1.bf16.msra.mxu0 %v470
    %627 = vmatprep.subr.bf16.mxu0 0
    %628 = vmatpush1.bf16.msra.mxu0 %v471
    %629 = vmatprep.subr.bf16.mxu0 0
    %630 = vmatpush1.bf16.msra.mxu0 %v472
    %631 = vmatprep.subr.bf16.mxu0 0
    %632 = vmatpush1.bf16.msra.mxu0 %v473
    %633 = vmatprep.subr.bf16.mxu0 0
    %634 = vmatpush1.bf16.msra.mxu0 %v474
    %635 = vmatprep.subr.bf16.mxu0 0
    %636 = vmatpush1.bf16.msra.mxu0 %v475
    %637 = vmatprep.subr.bf16.mxu0 0
    %638 = vmatpush1.bf16.msra.mxu0 %v476
    %639 = vmatprep.subr.bf16.mxu0 0
    %640 = vmatpush1.bf16.msra.mxu0 %v477
    %641 = vmatprep.subr.bf16.mxu0 0
    %642 = vmatpush1.bf16.msra.mxu0 %v478
    %643 = vmatprep.subr.bf16.mxu0 0
    %644 = vmatpush1.bf16.msra.mxu0 %v479
    %645 = vmatprep.subr.bf16.mxu0 0
    %646 = vmatpush1.bf16.msra.mxu0 %v480
    %647 = vmatprep.subr.bf16.mxu0 0
    %648 = vmatpush1.bf16.msra.mxu0 %v481
    %649 = vmatprep.subr.bf16.mxu0 0
    %650 = vmatpush1.bf16.msra.mxu0 %v482
    %651 = vmatprep.mubr.bf16.mxu0 %v182
    %652 = vmatmul.mubr.bf16.gmra.mrb[0].mxu0 %v181
    %v653 = vpop.f32.mrb[0].mxu0
    %v654 = vadd.f32 %v614, %v653
    %v655 = vpop.f32.mrb[0].mxu0
    %v656 = vpop.f32.mrb[0].mxu0
    %v657 = vpop.f32.mrb[0].mxu0
    %658 = vdwg.mxu0
    %659 = vmatprep.subr.bf16.mxu0 0
    %660 = vmatpush1.bf16.msra.mxu0 %v483
    %661 = vmatprep.subr.bf16.mxu0 0
    %662 = vmatpush1.bf16.msra.mxu0 %v484
    %663 = vmatprep.subr.bf16.mxu0 0
    %664 = vmatpush1.bf16.msra.mxu0 %v485
    %665 = vmatprep.subr.bf16.mxu0 0
    %666 = vmatpush1.bf16.msra.mxu0 %v486
    %667 = vmatprep.subr.bf16.mxu0 0
    %668 = vmatpush1.bf16.msra.mxu0 %v487
    %669 = vmatprep.subr.bf16.mxu0 0
    %670 = vmatpush1.bf16.msra.mxu0 %v488
    %671 = vmatprep.subr.bf16.mxu0 0
    %672 = vmatpush1.bf16.msra.mxu0 %v489
    %673 = vmatprep.subr.bf16.mxu0 0
    %674 = vmatpush1.bf16.msra.mxu0 %v490
    %675 = vmatprep.subr.bf16.mxu0 0
    %676 = vmatpush1.bf16.msra.mxu0 %v491
    %677 = vmatprep.subr.bf16.mxu0 0
    %678 = vmatpush1.bf16.msra.mxu0 %v492
    %679 = vmatprep.subr.bf16.mxu0 0
    %680 = vmatpush1.bf16.msra.mxu0 %v493
    %681 = vmatprep.subr.bf16.mxu0 0
    %682 = vmatpush1.bf16.msra.mxu0 %v494
    %683 = vmatprep.subr.bf16.mxu0 0
    %684 = vmatpush1.bf16.msra.mxu0 %v495
    %685 = vmatprep.subr.bf16.mxu0 0
    %686 = vmatpush1.bf16.msra.mxu0 %v496
    %687 = vmatprep.subr.bf16.mxu0 0
    %688 = vmatpush1.bf16.msra.mxu0 %v497
    %689 = vmatprep.subr.bf16.mxu0 0
    %690 = vmatpush1.bf16.msra.mxu0 %v498
    %691 = vmatprep.mubr.bf16.mxu0 %v184
    %692 = vmatmul.mubr.bf16.gmra.mrb[0].mxu0 %v183
    %v693 = vpop.f32.mrb[0].mxu0
    %v694 = vadd.f32 %v654, %v693
    %v695 = vpop.f32.mrb[0].mxu0
    %v696 = vpop.f32.mrb[0].mxu0
    %v697 = vpop.f32.mrb[0].mxu0
    %698 = vdwg.mxu0
    %699 = vmatprep.subr.bf16.mxu0 0
    %700 = vmatpush1.bf16.msra.mxu0 %v499
    %701 = vmatprep.subr.bf16.mxu0 0
    %702 = vmatpush1.bf16.msra.mxu0 %v500
    %703 = vmatprep.subr.bf16.mxu0 0
    %704 = vmatpush1.bf16.msra.mxu0 %v501
    %705 = vmatprep.subr.bf16.mxu0 0
    %706 = vmatpush1.bf16.msra.mxu0 %v502
    %707 = vmatprep.subr.bf16.mxu0 0
    %708 = vmatpush1.bf16.msra.mxu0 %v503
    %709 = vmatprep.subr.bf16.mxu0 0
    %710 = vmatpush1.bf16.msra.mxu0 %v504
    %711 = vmatprep.subr.bf16.mxu0 0
    %712 = vmatpush1.bf16.msra.mxu0 %v505
    %713 = vmatprep.subr.bf16.mxu0 0
    %714 = vmatpush1.bf16.msra.mxu0 %v506
    %715 = vmatprep.subr.bf16.mxu0 0
    %716 = vmatpush1.bf16.msra.mxu0 %v507
    %717 = vmatprep.subr.bf16.mxu0 0
    %718 = vmatpush1.bf16.msra.mxu0 %v508
    %719 = vmatprep.subr.bf16.mxu0 0
    %720 = vmatpush1.bf16.msra.mxu0 %v509
    %721 = vmatprep.subr.bf16.mxu0 0
    %722 = vmatpush1.bf16.msra.mxu0 %v510
    %723 = vmatprep.subr.bf16.mxu0 0
    %724 = vmatpush1.bf16.msra.mxu0 %v511
    %725 = vmatprep.subr.bf16.mxu0 0
    %726 = vmatpush1.bf16.msra.mxu0 %v512
    %727 = vmatprep.subr.bf16.mxu0 0
    %728 = vmatpush1.bf16.msra.mxu0 %v513
    %729 = vmatprep.subr.bf16.mxu0 0
    %730 = vmatpush1.bf16.msra.mxu0 %v514
    %731 = vmatprep.mubr.bf16.mxu0 %v186
    %732 = vmatmul.mubr.bf16.gmra.mrb[0].mxu0 %v185
    %v733 = vpop.f32.mrb[0].mxu0
    %v734 = vadd.f32 %v694, %v733
    %v735 = vpop.f32.mrb[0].mxu0
    %v736 = vpop.f32.mrb[0].mxu0
    %v737 = vpop.f32.mrb[0].mxu0
    %738 = vdwg.mxu0
    %v739 = vmax.f32 %v734, 0.0
    %v740 = vpack.c.bf16 %v739, %v739
    %v741 = vld [vmem:[%s3] sm:$0xf]
    %v742 = vld [vmem:[%s3 + $0x4] sm:$0xf]
    %v743 = vld [vmem:[%s3 + $0x8] sm:$0xf]
    %v744 = vld [vmem:[%s3 + $0xc] sm:$0xf]
    %v745 = vld [vmem:[%s3 + $0x10] sm:$0xf]
    %v746 = vld [vmem:[%s3 + $0x14] sm:$0xf]
    %v747 = vld [vmem:[%s3 + $0x18] sm:$0xf]
    %v748 = vld [vmem:[%s3 + $0x1c] sm:$0xf]
    %v749 = vld [vmem:[%s4] sm:$0x1]
    %v751 = vlaneseq
    %v752 = vshrl.u32 %v751, 7
    %v753 = vsub.s32 0, %v752
    %v754 = vrot.slane %v749, %v753
    %v764 = vunpack.c.l.b16 %v741
    %v765 = vunpack.c.l.b16 %v742
    %v766 = vunpack.c.l.b16 %v743
    %v767 = vunpack.c.l.b16 %v744
    %v768 = vunpack.c.l.b16 %v745
    %v769 = vunpack.c.l.b16 %v746
    %v770 = vunpack.c.l.b16 %v747
    %v771 = vunpack.c.l.b16 %v748
    %v772 = vpack.c.b16 %v765, %v764
    %v773 = vpack.c.b16 %v767, %v766
    %v774 = vpack.c.b16 %v769, %v768
    %v775 = vpack.c.b16 %v771, %v770
    %vm780 = vcmask 523264
    %v782 = vsel %vm780, %v740, 0
    %784 = vmatprep.subr.bf16.mxu0 0
    %785 = vmatpush1.bf16.msra.mxu0 %v772
    %786 = vmatprep.subr.bf16.mxu0 0
    %787 = vmatpush1.bf16.msra.mxu0 %v773
    %788 = vmatprep.subr.bf16.mxu0 0
    %789 = vmatpush1.bf16.msra.mxu0 %v774
    %790 = vmatprep.subr.bf16.mxu0 0
    %791 = vmatpush1.bf16.msra.mxu0 %v775
    %792 = vmatprep.subr.bf16.mxu0 0
    %793 = vmatpush1.bf16.msra.mxu0 0
    %794 = vmatprep.subr.bf16.mxu0 0
    %795 = vmatpush1.bf16.msra.mxu0 0
    %796 = vmatprep.subr.bf16.mxu0 0
    %797 = vmatpush1.bf16.msra.mxu0 0
    %798 = vmatprep.subr.bf16.mxu0 0
    %799 = vmatpush1.bf16.msra.mxu0 0
    %800 = vmatprep.subr.bf16.mxu0 0
    %801 = vmatpush1.bf16.msra.mxu0 0
    %802 = vmatprep.subr.bf16.mxu0 0
    %803 = vmatpush1.bf16.msra.mxu0 0
    %804 = vmatprep.subr.bf16.mxu0 0
    %805 = vmatpush1.bf16.msra.mxu0 0
    %806 = vmatprep.subr.bf16.mxu0 0
    %807 = vmatpush1.bf16.msra.mxu0 0
    %808 = vmatprep.subr.bf16.mxu0 0
    %809 = vmatpush1.bf16.msra.mxu0 0
    %810 = vmatprep.subr.bf16.mxu0 0
    %811 = vmatpush1.bf16.msra.mxu0 0
    %812 = vmatprep.subr.bf16.mxu0 0
    %813 = vmatpush1.bf16.msra.mxu0 0
    %814 = vmatprep.subr.bf16.mxu0 0
    %815 = vmatpush1.bf16.msra.mxu0 0
    %816 = vmatprep.mubr.bf16.mxu0 0
    %817 = vmatmul.mubr.bf16.gmra.mrb[0].mxu0 %v782
    %v818 = vpop.f32.mrb[0].mxu0
    %v819 = vadd.f32 %v754, %v818
    %v820 = vpop.f32.mrb[0].mxu0
    %v821 = vpop.f32.mrb[0].mxu0
    %v822 = vpop.f32.mrb[0].mxu0
    %823 = vdwg.mxu0
    %v824 = vmax.f32 %v819, 0.0
    %v825 = vpack.c.bf16 %v824, %v824
    %v826 = vld [vmem:[%s5] sm:$0xf]
    %v827 = vld [vmem:[%s5 + $0x4] sm:$0xf]
    %v828 = vld [vmem:[%s5 + $0x8] sm:$0xf]
    %v829 = vld [vmem:[%s5 + $0xc] sm:$0xf]
    %v830 = vld [vmem:[%s5 + $0x10] sm:$0xf]
    %v831 = vld [vmem:[%s5 + $0x14] sm:$0xf]
    %v832 = vld [vmem:[%s5 + $0x18] sm:$0xf]
    %v833 = vld [vmem:[%s5 + $0x1c] sm:$0xf]
    %v834 = vld [vmem:[%s6] sm:$0x1]
    %v836 = vlaneseq
    %v837 = vshrl.u32 %v836, 7
    %v838 = vsub.s32 0, %v837
    %v839 = vrot.slane %v834, %v838
    %v849 = vunpack.c.l.b16 %v826
    %v850 = vunpack.c.l.b16 %v827
    %v851 = vunpack.c.l.b16 %v828
    %v852 = vunpack.c.l.b16 %v829
    %v853 = vunpack.c.l.b16 %v830
    %v854 = vunpack.c.l.b16 %v831
    %v855 = vunpack.c.l.b16 %v832
    %v856 = vunpack.c.l.b16 %v833
    %v857 = vpack.c.b16 %v850, %v849
    %v858 = vpack.c.b16 %v852, %v851
    %v859 = vpack.c.b16 %v854, %v853
    %v860 = vpack.c.b16 %v856, %v855
    %v866 = vsel %vm780, %v825, 0
    %868 = vmatprep.subr.bf16.mxu0 0
    %869 = vmatpush1.bf16.msra.mxu0 %v857
    %870 = vmatprep.subr.bf16.mxu0 0
    %871 = vmatpush1.bf16.msra.mxu0 %v858
    %872 = vmatprep.subr.bf16.mxu0 0
    %873 = vmatpush1.bf16.msra.mxu0 %v859
    %874 = vmatprep.subr.bf16.mxu0 0
    %875 = vmatpush1.bf16.msra.mxu0 %v860
    %876 = vmatprep.subr.bf16.mxu0 0
    %877 = vmatpush1.bf16.msra.mxu0 0
    %878 = vmatprep.subr.bf16.mxu0 0
    %879 = vmatpush1.bf16.msra.mxu0 0
    %880 = vmatprep.subr.bf16.mxu0 0
    %881 = vmatpush1.bf16.msra.mxu0 0
    %882 = vmatprep.subr.bf16.mxu0 0
    %883 = vmatpush1.bf16.msra.mxu0 0
    %884 = vmatprep.subr.bf16.mxu0 0
    %885 = vmatpush1.bf16.msra.mxu0 0
    %886 = vmatprep.subr.bf16.mxu0 0
    %887 = vmatpush1.bf16.msra.mxu0 0
    %888 = vmatprep.subr.bf16.mxu0 0
    %889 = vmatpush1.bf16.msra.mxu0 0
    %890 = vmatprep.subr.bf16.mxu0 0
    %891 = vmatpush1.bf16.msra.mxu0 0
    %892 = vmatprep.subr.bf16.mxu0 0
    %893 = vmatpush1.bf16.msra.mxu0 0
    %894 = vmatprep.subr.bf16.mxu0 0
    %895 = vmatpush1.bf16.msra.mxu0 0
    %896 = vmatprep.subr.bf16.mxu0 0
    %897 = vmatpush1.bf16.msra.mxu0 0
    %898 = vmatprep.subr.bf16.mxu0 0
    %899 = vmatpush1.bf16.msra.mxu0 0
    %900 = vmatprep.mubr.bf16.mxu0 0
    %901 = vmatmul.mubr.bf16.gmra.mrb[0].mxu0 %v866
    %v902 = vpop.f32.mrb[0].mxu0
    %v903 = vadd.f32 %v839, %v902
    %v904 = vpop.f32.mrb[0].mxu0
    %v905 = vpop.f32.mrb[0].mxu0
    %v906 = vpop.f32.mrb[0].mxu0
    %907 = vdwg.mxu0
    %vm908 = vcmask 64512
    %909 = vst.msk [vmem:[#allocation2] sm:$0xff] %vm908, %v903
    // Predicated region
    $region30: #{tpu_custom_call.1} parent=1 // pred_check
      _
    $region31: #{tpu_custom_call.1} parent=1 // pred_check_branch
      %911 = sbr.rel (0) target = $region33
    $region32: #{tpu_custom_call.1} parent=1 // pred_region
      %s913 = ssub.s32 128, 128
      %914 = vsyncadd [#allocation3], %s913
      %s916 = sshll.u32 [#allocation2], 4
      %s917 = int_to_ptr.vmem [resolvable:$true] %s916
      %919 = dma.vmem_to_hbm [thread:$0]  %s917, 128, %s7, [#allocation3]
    $region33: #{tpu_custom_call.1} parent=1 // pred_fallthru
      _
    // Predicated region
    $region34: #{tpu_custom_call.1} parent=1 // pred_check
      _
    $region35: #{tpu_custom_call.1} parent=1 // pred_check_branch
      %921 = sbr.rel (0) target = $region37
    $region36: #{tpu_custom_call.1} parent=1 // pred_region
      %922 = dma.done [#allocation3], 128
    $region37: #{tpu_custom_call.1} parent=1 // pred_fallthru
      _
    %923 = vsyncpa [#allocation3], 1

</llo_original>
